<compile_context>
chip_gen: v6e
topology: v6e:2x2x1
jax: 0.10.0
libtpu: 0.0.40
codegen_flags: <defaults>
</compile_context>

<pallas_src>
import jax
import jax.numpy as jnp
from jax.experimental import pallas as pl
from jax.experimental.pallas import tpu as pltpu


def _mul_bcast_kernel(x_ref, s_ref, o_ref):
    # x_ref: (TR, HW) tile, s_ref: (TR, 1) per-channel scale, o_ref: (TR, HW)
    o_ref[...] = (x_ref[...] * s_ref[...]).astype(o_ref.dtype)


def _round_up(x, m):
    return ((x + m - 1) // m) * m


def _sublane_align(dtype):
    # Sub-32-bit dtypes pack along sublanes: bf16 vreg = [16,128], int8 = [32,128].
    return {4: 8, 2: 16, 1: 32}.get(jnp.dtype(dtype).itemsize, 8)


def channel_scale_mul(x, s, *, vmem_budget_bytes=12 * 1024 * 1024):
    """x * s with x: (N, C, H, W), s: (N, C, 1, 1)."""
    N, C, H, W = x.shape
    assert s.shape == (N, C, 1, 1)
    rows = N * C
    HW = H * W
    out_dtype = jnp.result_type(x.dtype, s.dtype)

    x2 = x.reshape(rows, HW)
    s2 = s.reshape(rows, 1)

    x_isz = jnp.dtype(x.dtype).itemsize
    s_isz = jnp.dtype(s.dtype).itemsize
    o_isz = jnp.dtype(out_dtype).itemsize

    align = max(_sublane_align(x.dtype), _sublane_align(s.dtype),
                _sublane_align(out_dtype))

    # Per-row VMEM footprint with lane padding (HW rounds up to 128 lanes; the
    # (TR, 1) scale column also pads to 128 lanes), double-buffered by the
    # auto-pipeline.
    hw_pad = _round_up(HW, 128)
    per_row_bytes = hw_pad * (x_isz + o_isz) + 128 * s_isz
    max_rows = max(align,
                   ((vmem_budget_bytes // (2 * per_row_bytes)) // align) * align)

    if rows <= 2 * align:
        # Too small to split usefully; one block covering the whole slab
        # (block dim == full array dim satisfies the tiling rule).
        tile_rows = rows
    else:
        # Start with 2 equal blocks (balanced across the 2 TensorCores on
        # v7x), growing the block count only if a block would exceed the
        # VMEM budget.
        n_blocks = 2
        while True:
            tile_rows = _round_up(pl.cdiv(rows, n_blocks), align)
            if tile_rows <= max_rows or tile_rows <= align:
                break
            n_blocks += 1

    grid = (pl.cdiv(rows, tile_rows),)

    cost = pl.CostEstimate(
        flops=rows * HW,
        transcendentals=0,
        bytes_accessed=rows * HW * (x_isz + o_isz) + rows * s_isz,
    )

    out2 = pl.pallas_call(
        _mul_bcast_kernel,
        out_shape=jax.ShapeDtypeStruct((rows, HW), out_dtype),
        grid=grid,
        in_specs=[
            pl.BlockSpec((tile_rows, HW), lambda i: (i, 0)),
            pl.BlockSpec((tile_rows, 1), lambda i: (i, 0)),
        ],
        out_specs=pl.BlockSpec((tile_rows, HW), lambda i: (i, 0)),
        compiler_params=pltpu.CompilerParams(
            dimension_semantics=("parallel",)
        ),
        cost_estimate=cost,
    )(x2, s2)

    return out2.reshape(N, C, H, W)


if __name__ == "__main__":
    key = jax.random.PRNGKey(0)
    k1, k2, k3, k4, k5, k6 = jax.random.split(key, 6)

    # Test 1: small shape consistent with the module's (1, 1056, 14, 14) *
    # (1, 1056, 1, 1) — keep the real 14x14 spatial (HW=196, non-128-multiple)
    # so the padded-lane / masked-store path is exercised. rows=32 -> two
    # balanced 16-row blocks (grid=(2,)).
    N, C, H, W = 1, 32, 14, 14
    x373 = jax.random.normal(k1, (N, C, H, W), dtype=jnp.float32)
    x378 = jax.random.normal(k2, (N, C, 1, 1), dtype=jnp.float32)

    out = jax.block_until_ready(channel_scale_mul(x373, x378))
    ref = x373 * x378
    assert out.shape == (N, C, H, W)
    assert out.dtype == ref.dtype
    assert jnp.allclose(out, ref, atol=1e-6, rtol=1e-6)

    # Test 2: rows not a multiple of the alignment (rows=40) -> 2 blocks with
    # a padded last block; checks the cdiv / masked-store path.
    N2, C2, H2, W2 = 2, 20, 8, 8
    xa = jax.random.normal(k3, (N2, C2, H2, W2), dtype=jnp.float32)
    sa = jax.random.normal(k4, (N2, C2, 1, 1), dtype=jnp.float32)
    out2 = jax.block_until_ready(channel_scale_mul(xa, sa))
    ref2 = xa * sa
    assert out2.shape == (N2, C2, H2, W2)
    assert jnp.allclose(out2, ref2, atol=1e-6, rtol=1e-6)

    # Test 3: bf16 path — exercises the dtype-aware 16-row sublane alignment
    # (rows=48 -> tile_rows=32, ragged second block).
    N3, C3, H3, W3 = 1, 48, 14, 14
    xb = jax.random.normal(k5, (N3, C3, H3, W3), dtype=jnp.bfloat16)
    sb = jax.random.normal(k6, (N3, C3, 1, 1), dtype=jnp.bfloat16)
    out3 = jax.block_until_ready(channel_scale_mul(xb, sb))
    ref3 = xb * sb
    assert out3.shape == (N3, C3, H3, W3)
    assert out3.dtype == jnp.bfloat16
    assert jnp.allclose(out3.astype(jnp.float32), ref3.astype(jnp.float32),
                        atol=1e-2, rtol=1e-2)

    print("KERNEL_OK")
</pallas_src>

<mosaic_0001>
module attributes {stable_mosaic.version = 11 : i64} {
  func.func @_mul_bcast_kernel(%arg0: i32, %arg1: memref<16x196xf32, #tpu.memory_space<vmem>>, %arg2: memref<16x1xf32, #tpu.memory_space<vmem>>, %arg3: memref<16x196xf32, #tpu.memory_space<vmem>>) attributes {dimension_semantics = [#tpu.dimension_semantics<parallel>], iteration_bounds = array<i64: 2>, scalar_prefetch = 0 : i64, scratch_operands = 0 : i64, tpu.core_type = #tpu.core_type<tc>, window_params = [{transform_indices = @transform_0, window_bounds = array<i64: 16, 196>}, {transform_indices = @transform_1, window_bounds = array<i64: 16, 1>}, {transform_indices = @transform_2, window_bounds = array<i64: 16, 196>}]} {
    %c0 = arith.constant 0 : index
    %c0_0 = arith.constant 0 : index
    %0 = vector.load %arg1[%c0, %c0_0] : memref<16x196xf32, #tpu.memory_space<vmem>>, vector<16x196xf32>
    %c0_1 = arith.constant 0 : index
    %c0_2 = arith.constant 0 : index
    %1 = vector.load %arg2[%c0_1, %c0_2] : memref<16x1xf32, #tpu.memory_space<vmem>>, vector<16x1xf32>
    %2 = vector.broadcast %1 : vector<16x1xf32> to vector<16x196xf32>
    %3 = arith.mulf %0, %2 : vector<16x196xf32>
    %c0_3 = arith.constant 0 : index
    %c0_4 = arith.constant 0 : index
    %4 = vector.load %arg3[%c0_3, %c0_4] : memref<16x196xf32, #tpu.memory_space<vmem>>, vector<16x196xf32>
    tpu.vector_store %arg3[%c0_3, %c0_4], %3 {strides = array<i32>} : memref<16x196xf32, #tpu.memory_space<vmem>>, vector<16x196xf32>,
    return
  }
  func.func @transform_0(%arg0: i32) -> (i32, i32) {
    %c0_i32 = arith.constant 0 : i32
    %c0_i32_0 = arith.constant 0 : i32
    return %arg0, %c0_i32 : i32, i32
  }
  func.func @transform_1(%arg0: i32) -> (i32, i32) {
    %c0_i32 = arith.constant 0 : i32
    %c0_i32_0 = arith.constant 0 : i32
    return %arg0, %c0_i32 : i32, i32
  }
  func.func @transform_2(%arg0: i32) -> (i32, i32) {
    %c0_i32 = arith.constant 0 : i32
    %c0_i32_0 = arith.constant 0 : i32
    return %arg0, %c0_i32 : i32, i32
  }
}

</mosaic_0001>

<llo_original>
// kernel: tpu_custom_call.1
$region0: #{tpu_custom_call.1}
  #allocation0 [shape = 'u32[]', space=smem, size = 0x4, offset = 0x4, fixed_abs, tag = 'smem constant byte address 0x4 - core index']
  #allocation1 [shape = 'u32[144,128]{1,0:T(1,128)}', space=vmem, size = 0x12000, scoped, tag = 'internal scratch']
  %s0 = inlined_call_operand.hbm [shape: f32[32,196], index: 0, kind: input, shape index: {}]
  %s1 = inlined_call_operand.vmem [shape: f32[32,1], index: 1, kind: input, shape index: {}]
  %s2 = inlined_call_operand.hbm [shape: f32[32,196], index: 2, kind: output, shape index: {}]
  %s3 = sld [smem:[#allocation0]]
  $region45: #{tpu_custom_call.1} parent=0
    _
  %s5 = ssub.s32 1, %s3
  %s6 = scalar_select 0, %s5, %s3
  $region1: #{tpu_custom_call.1} parent=0
    #allocation2 [shape = 'u8[32768]{0}', space=vmem, size = 0x8000, scoped, tag = 'input window, operand 0']
    #allocation3 [shape = 's32[2]{0}', space=sflag, size = 0x8, scoped, tag = 'scoped memory for tpu_custom_call.1']
    #allocation4 [shape = 's32[2]{0}', space=sflag, size = 0x8, scoped, tag = 'scoped memory for tpu_custom_call.1']
    #allocation5 [shape = 'u8[32768]{0}', space=vmem, size = 0x8000, scoped, tag = 'output window, operand 0']
    %7 = vsyncpa [#allocation3], 0
    %s8 = scalar_lea.sflag [#allocation3], 1
    %9 = vsyncpa %s8, 0
    %10 = vsyncpa [#allocation4], 0
    %s11 = scalar_lea.sflag [#allocation4], 1
    %12 = vsyncpa %s11, 0
    loop: start=0, step=1, limit=4
    $region2: #{tpu_custom_call.1} parent=1 // loop_pre_header
      _
    $region3: #{tpu_custom_call.1} parent=1 // loop_header
      %s14 = sphi 0, %s18
      %p15 = scmp.ge.s32.totalorder %s14, 4
      %s24 = sphi 0, %s26
      %s27 = sphi 0, %s24
      %s28 = sphi 0, %s27
      %s44 = sphi 0, %s28
      %s50 = sphi 0, %s52
      %s53 = sphi 0, %s50
      %s54 = sphi 0, %s53
      %s70 = sphi 0, %s54
      %s76 = sphi 0, %s78
      %s79 = sphi 0, %s76
      %s80 = sphi 0, %s79
      %s96 = sphi 0, %s80
    $region4: #{tpu_custom_call.1} parent=1 // loop_header_branch
      %17 = sbr.rel (%p15) target = $region8
    $region5: #{tpu_custom_call.1} parent=1 // loop_body
      %s19 = ssub.s32 %s14, 1
      %s20 = ssub.s32 %s14, 2
      %s21 = sadd.s32 %s14, 1
      %s22 = ssub.s32 %s14, %s21
      %p23 = scmp.eq.s32.totalorder %s22, 0
      %s25 = sadd.s32 %s24, 1
      %s26 = scalar_select %p23, %s24, %s25
      %p29 = pneg %p23
      %p30 = scmp.eq.s32.totalorder %s14, 1
      %p31 = por %p29, %p30
      %p32 = scmp.ne.s32.totalorder %s24, %s27
      %p33 = scmp.eq.s32.totalorder %s14, 0
      %p34 = por %p32, %p33
      %p35 = scmp.ne.s32.totalorder %s24, %s27
      %p36 = scmp.eq.s32.totalorder %s19, 1
      %p37 = por %p35, %p36
      %p38 = scmp.ne.s32.totalorder %s27, %s28
      %p39 = scmp.eq.s32.totalorder %s19, 0
      %p40 = por %p38, %p39
      %p41 = scmp.ne.s32.totalorder %s27, %s28
      %p42 = scmp.eq.s32.totalorder %s20, 1
      %p43 = por %p41, %p42
      %p45 = scmp.ne.s32.totalorder %s28, %s44
      %p46 = scmp.eq.s32.totalorder %s20, 0
      %p47 = por %p45, %p46
      %s48 = ssub.s32 %s14, %s21
      %p49 = scmp.eq.s32.totalorder %s48, 0
      %s51 = sadd.s32 %s50, 1
      %s52 = scalar_select %p49, %s50, %s51
      %p55 = pneg %p49
      %p56 = scmp.eq.s32.totalorder %s14, 1
      %p57 = por %p55, %p56
      %p58 = scmp.ne.s32.totalorder %s50, %s53
      %p59 = scmp.eq.s32.totalorder %s14, 0
      %p60 = por %p58, %p59
      %p61 = scmp.ne.s32.totalorder %s50, %s53
      %p62 = scmp.eq.s32.totalorder %s19, 1
      %p63 = por %p61, %p62
      %p64 = scmp.ne.s32.totalorder %s53, %s54
      %p65 = scmp.eq.s32.totalorder %s19, 0
      %p66 = por %p64, %p65
      %p67 = scmp.ne.s32.totalorder %s53, %s54
      %p68 = scmp.eq.s32.totalorder %s20, 1
      %p69 = por %p67, %p68
      %p71 = scmp.ne.s32.totalorder %s54, %s70
      %p72 = scmp.eq.s32.totalorder %s20, 0
      %p73 = por %p71, %p72
      %s74 = ssub.s32 %s14, %s21
      %p75 = scmp.eq.s32.totalorder %s74, 0
      %s77 = sadd.s32 %s76, 1
      %s78 = scalar_select %p75, %s76, %s77
      %p81 = pneg %p75
      %p82 = scmp.eq.s32.totalorder %s14, 1
      %p83 = por %p81, %p82
      %p84 = scmp.ne.s32.totalorder %s76, %s79
      %p85 = scmp.eq.s32.totalorder %s14, 0
      %p86 = por %p84, %p85
      %p87 = scmp.ne.s32.totalorder %s76, %s79
      %p88 = scmp.eq.s32.totalorder %s19, 1
      %p89 = por %p87, %p88
      %p90 = scmp.ne.s32.totalorder %s79, %s80
      %p91 = scmp.eq.s32.totalorder %s19, 0
      %p92 = por %p90, %p91
      %p93 = scmp.ne.s32.totalorder %s79, %s80
      %p94 = scmp.eq.s32.totalorder %s20, 1
      %p95 = por %p93, %p94
      %p97 = scmp.ne.s32.totalorder %s80, %s96
      %p98 = scmp.eq.s32.totalorder %s20, 0
      %p99 = por %p97, %p98
      %p100 = scmp.le.s32.totalorder 1, %s14
      %p101 = scmp.lt.s32.totalorder %s14, 3
      %p102 = pnand %p100, %p101
      %p103 = pneg %p102
      // Predicated region
      $region9: #{tpu_custom_call.1} parent=5 // pred_check
        _
      $region10: #{tpu_custom_call.1} parent=5 // pred_check_branch
        %105 = sbr.rel (%p102) target = $region12
      $region11: #{tpu_custom_call.1} parent=5 // pred_region
        %s106 = ssub.s32 %s14, 1
      $region12: #{tpu_custom_call.1} parent=5 // pred_fallthru
        _
      %p107 = scmp.lt.s32.totalorder %s14, 2
      // Predicated region
      $region13: #{tpu_custom_call.1} parent=5 // pred_check
        %p108 = pneg %p107
      $region14: #{tpu_custom_call.1} parent=5 // pred_check_branch
        %110 = sbr.rel (%p108) target = $region16
      $region15: #{tpu_custom_call.1} parent=5 // pred_region
        // Predicated region
        $region17: #{tpu_custom_call.1} parent=15 // pred_check
          %p111 = pneg %p34
        $region18: #{tpu_custom_call.1} parent=15 // pred_check_branch
          %113 = sbr.rel (%p111) target = $region20
        $region19: #{tpu_custom_call.1} parent=15 // pred_region
          %s114 = sand.u32 %s24, 1
          %s115 = scalar_lea.sflag [#allocation3], %s114
          %s116 = sand.u32 %s24, 1
          %s117 = smul.addr %s116, 32
          %s118 = scalar_lea.vmem [#allocation2], %s117
          %s119 = smul.u32 2, %s14
          %s121 = ssub.s32 512, 512
          %122 = vsyncadd %s115, %s121
          %s123 = smul.addr %s119, 2
          %s124 = smul.addr %s123, 128
          %s125 = scalar_lea.hbm %s0, %s124
          %s126 = sshll.u32 %s118, 4
          %s127 = int_to_ptr.vmem [resolvable:$true] %s126
          %132 = dma.hbm_to_vmem [thread:$0]  %s125, 512, %s127, %s115, 256, 256, 16
        $region20: #{tpu_custom_call.1} parent=15 // pred_fallthru
          _
        // Predicated region
        $region21: #{tpu_custom_call.1} parent=15 // pred_check
          %p133 = pneg %p60
        $region22: #{tpu_custom_call.1} parent=15 // pred_check_branch
          %135 = sbr.rel (%p133) target = $region24
        $region23: #{tpu_custom_call.1} parent=15 // pred_region
          %s136 = smul.u32 2, %s14
          %p137 = scmp.lt.s32.totalorder %s136, 3
          %s138 = scalar_select %p137, %s136, 3
          %s139 = smul.addr %s138, 8
          %s140 = scalar_lea.vmem %s1, %s139
          %s141 = smul.u32 2, %s14
        $region24: #{tpu_custom_call.1} parent=15 // pred_fallthru
          _
      $region16: #{tpu_custom_call.1} parent=5 // pred_fallthru
        _
      %p142 = scmp.le.s32.totalorder 1, %s14
      %p143 = scmp.lt.s32.totalorder %s14, 3
      %p144 = pnand %p142, %p143
      %p145 = pneg %p144
      // Predicated region
      $region25: #{tpu_custom_call.1} parent=5 // pred_check
        _
      $region26: #{tpu_custom_call.1} parent=5 // pred_check_branch
        %147 = sbr.rel (%p144) target = $region28
      $region27: #{tpu_custom_call.1} parent=5 // pred_region
        %s148 = ssub.s32 %s14, 1
        %s149 = sand.u32 %s27, 1
        %s150 = scalar_lea.sflag [#allocation3], %s149
        %s151 = sand.u32 %s27, 1
        %s152 = smul.addr %s151, 32
        %s153 = scalar_lea.vmem [#allocation2], %s152
        // Predicated region
        $region29: #{tpu_custom_call.1} parent=27 // pred_check
          %p154 = pneg %p40
        $region30: #{tpu_custom_call.1} parent=27 // pred_check_branch
          %156 = sbr.rel (%p154) target = $region32
        $region31: #{tpu_custom_call.1} parent=27 // pred_region
          %157 = dma.done %s150, 512
        $region32: #{tpu_custom_call.1} parent=27 // pred_fallthru
          _
        %s158 = sand.u32 %s27, 1
        %s159 = scalar_lea.sflag [#allocation3], %s158
        %s160 = sand.u32 %s27, 1
        %s161 = smul.addr %s160, 32
        %s162 = scalar_lea.vmem [#allocation2], %s161
        %p163 = pneg %p40
        %p164 = pneg %p37
        %s165 = smul.u32 2, %s19
        %p166 = scmp.lt.s32.totalorder %s165, 3
        %s167 = scalar_select %p166, %s165, 3
        %s168 = smul.addr %s167, 8
        %s169 = scalar_lea.vmem %s1, %s168
        %p170 = pneg %p66
        %p171 = pneg %p63
        %p172 = pneg %p92
        %p173 = pneg %p89
        %s174 = sand.u32 %s79, 1
        %s175 = scalar_lea.sflag [#allocation4], %s174
        %s176 = sand.u32 %s79, 1
        %s177 = smul.addr %s176, 32
        %s178 = scalar_lea.vmem [#allocation5], %s177
        %s179 = smul.u32 2, %s19
        %s180 = smul.u32 2, %s19
        %p181 = scmp.lt.s32.totalorder %s180, 3
        %s182 = scalar_select %p181, %s180, 3
        %s183 = smul.addr %s182, 8
        %s184 = scalar_lea.vmem %s1, %s183
        %s185 = smul.u32 2, %s19
        %s186 = smul.u32 2, %s19
        %v187 = vld [vmem:[%s153] sm:$0xff]
        %v188 = vld [vmem:[%s153 + $0x8] sm:$0xff]
        %v189 = vld [vmem:[%s153 + $0x10] sm:$0xff]
        %v190 = vld [vmem:[%s153 + $0x18] sm:$0xff]
        %v191 = vld [vmem:[%s184] sm:$0xff]
        %v192 = vld [vmem:[%s184 + $0x8] sm:$0xff]
        %194 = vset.pattern.permute.xlu0 0
        %195 = vperm.xlu0 %194, %v191
        %v196 = vpop.permute.xlu0 %195
        %199 = vset.pattern.permute.xlu0 0
        %200 = vperm.xlu0 %199, %v192
        %v201 = vpop.permute.xlu0 %200
        %v203 = vmul.f32 %v187, %v196
        %v204 = vmul.f32 %v188, %v196
        %v205 = vmul.f32 %v189, %v201
        %v206 = vmul.f32 %v190, %v201
        %207 = vst [vmem:[%s178] sm:$0xff] %v203
        %vm208 = vcmask 556032
        %209 = vst.msk [vmem:[%s178 + $0x8] sm:$0xff] %vm208, %v204
        %210 = vst [vmem:[%s178 + $0x10] sm:$0xff] %v205
        %211 = vst.msk [vmem:[%s178 + $0x18] sm:$0xff] %vm208, %v206
        %s212 = sand.u32 %s79, 1
        %s213 = scalar_lea.sflag [#allocation4], %s212
        %s214 = sand.u32 %s79, 1
        %s215 = smul.addr %s214, 32
        %s216 = scalar_lea.vmem [#allocation5], %s215
        // Predicated region
        $region33: #{tpu_custom_call.1} parent=27 // pred_check
          %p217 = pneg %p89
        $region34: #{tpu_custom_call.1} parent=27 // pred_check_branch
          %219 = sbr.rel (%p217) target = $region36
        $region35: #{tpu_custom_call.1} parent=27 // pred_region
          %s220 = smul.u32 2, %s19
          %s222 = ssub.s32 512, 512
          %223 = vsyncadd %s213, %s222
          %s224 = smul.addr %s220, 2
          %s225 = smul.addr %s224, 128
          %s226 = scalar_lea.hbm %s2, %s225
          %s227 = sshll.u32 %s216, 4
          %s228 = int_to_ptr.vmem [resolvable:$true] %s227
          %233 = dma.vmem_to_hbm [thread:$0]  %s228, 512, %s226, %s213, 256, 256, 16
        $region36: #{tpu_custom_call.1} parent=27 // pred_fallthru
          _
      $region28: #{tpu_custom_call.1} parent=5 // pred_fallthru
        _
      %p234 = scmp.le.s32.totalorder 2, %s14
      // Predicated region
      $region37: #{tpu_custom_call.1} parent=5 // pred_check
        %p235 = pneg %p234
      $region38: #{tpu_custom_call.1} parent=5 // pred_check_branch
        %237 = sbr.rel (%p235) target = $region40
      $region39: #{tpu_custom_call.1} parent=5 // pred_region
        %s238 = ssub.s32 %s14, 2
        // Predicated region
        $region41: #{tpu_custom_call.1} parent=39 // pred_check
          %p239 = pneg %p95
        $region42: #{tpu_custom_call.1} parent=39 // pred_check_branch
          %241 = sbr.rel (%p239) target = $region44
        $region43: #{tpu_custom_call.1} parent=39 // pred_region
          %s242 = sand.u32 %s80, 1
          %s243 = scalar_lea.sflag [#allocation4], %s242
          %s244 = sand.u32 %s80, 1
          %s245 = smul.addr %s244, 32
          %s246 = scalar_lea.vmem [#allocation5], %s245
          %247 = dma.done %s243, 512
        $region44: #{tpu_custom_call.1} parent=39 // pred_fallthru
          _
      $region40: #{tpu_custom_call.1} parent=5 // pred_fallthru
        _
    $region6: #{tpu_custom_call.1} parent=1 // loop_footer
      %s18 = sadd.s32 1, %s14
    $region7: #{tpu_custom_call.1} parent=1 // loop_footer_branch
      %13 = sbr.rel target = $region3
    $region8: #{tpu_custom_call.1} parent=1 // loop_exit
      _
    %248 = vsyncpa [#allocation3], 1
    %s249 = scalar_lea.sflag [#allocation3], 1
    %250 = vsyncpa %s249, 1
    %251 = vsyncpa [#allocation4], 1
    %s252 = scalar_lea.sflag [#allocation4], 1
    %253 = vsyncpa %s252, 1

</llo_original>
